<compile_context>
chip_gen: v7x
topology: tpu7x:2x2x1
jax: 0.10.0
libtpu: 0.0.40
codegen_flags: <defaults>
</compile_context>

<pallas_src>
import jax
import jax.numpy as jnp
from jax import lax
from jax.experimental import pallas as pl
from jax.experimental.pallas import tpu as pltpu

EPS = 1e-5


# ----------------------------------------------------------------------------
# Kernels
# ----------------------------------------------------------------------------
def fc_bn_fused_kernel(x_ref, w_ref, gamma_ref, beta_ref, o_ref):
    """Path 1: grid = (Nout//tn,).  x resident (M, K); weight tile (tn, K).

    Single dot over the full contraction + BN epilogue; no accumulation."""
    # (M, K) bf16 contracted with (tn, K) bf16 on dim 1 of both -> (M, tn) f32.
    y = lax.dot_general(
        x_ref[...], w_ref[...],
        dimension_numbers=(((1,), (1,)), ((), ())),
        preferred_element_type=jnp.float32)

    # BatchNorm1d (training mode): per-feature batch mean / biased variance.
    # NOTE: for very large M this epilogue could be chunked over rows to limit
    # vreg pressure; at FC-typical batch sizes the direct form is cheapest.
    mu = jnp.mean(y, axis=0, keepdims=True)
    var = jnp.mean((y - mu) ** 2, axis=0, keepdims=True)
    inv_std = lax.rsqrt(var + EPS)
    o_ref[...] = ((y - mu) * inv_std * gamma_ref[...]
                  + beta_ref[...]).astype(o_ref.dtype)


def _make_kacc_kernel(x_resident, tk):
    """Path 2: grid = (Nout//tn, K//tk); accumulate into the resident output."""

    def kernel(x_ref, w_ref, gamma_ref, beta_ref, o_ref):
        k = pl.program_id(1)

        @pl.when(k == 0)
        def _():
            o_ref[...] = jnp.zeros_like(o_ref)

        if x_resident:
            # x was DMA'd once (constant index_map); slice the K chunk in VMEM.
            off = pl.multiple_of(k * tk, tk)
            x_tile = x_ref[:, pl.ds(off, tk)]
        else:
            x_tile = x_ref[...]

        # (M, tk) @ (tn, tk)^T -> (M, tn) f32, accumulated into the
        # VMEM-resident output tile (out BlockSpec ignores the k grid index).
        o_ref[...] += lax.dot_general(
            x_tile, w_ref[...],
            dimension_numbers=(((1,), (1,)), ((), ())),
            preferred_element_type=jnp.float32)

        @pl.when(k == pl.num_programs(1) - 1)
        def _():
            y = o_ref[...]
            mu = jnp.mean(y, axis=0, keepdims=True)
            var = jnp.mean((y - mu) ** 2, axis=0, keepdims=True)
            inv_std = lax.rsqrt(var + EPS)
            o_ref[...] = ((y - mu) * inv_std * gamma_ref[...]
                          + beta_ref[...]).astype(o_ref.dtype)

    return kernel


# ----------------------------------------------------------------------------
# Tile / VMEM helpers
# ----------------------------------------------------------------------------
def _vmem_capacity_bytes():
    """Per-core VMEM capacity; conservative fallback if the query fails."""
    try:
        info = pltpu.get_tpu_info()
        cap = int(getattr(info, "vmem_capacity_bytes", 0))
        if cap > 0:
            return cap
    except Exception:
        pass
    return 64 * 1024 * 1024  # v7x-safe fallback


def _pick_tile(dim, cap, units=(256, 128)):
    """Largest divisor of `dim` that is a multiple of a preferred unit and <= cap.

    Prefers 256-multiples (v6e/v7x MXU width), then 128-multiples; returns the
    full dim when it already fits (full-extent blocks are always legal)."""
    if dim <= cap:
        return dim
    for unit in units:
        t = (cap // unit) * unit
        while t >= unit:
            if dim % t == 0:
                return t
            t -= unit
    return dim  # no aligned divisor fits the cap; correctness over budget.


# ----------------------------------------------------------------------------
# Wrapper
# ----------------------------------------------------------------------------
def fc_forward(x, w, b, gamma, beta, *, tn=None, tk=None, _force_stream_x=False):
    """x: [M, K], w: [Nout, K] (native PyTorch layout), b/gamma/beta: [Nout]."""
    del b  # Linear bias cancels exactly in BN's (y - mean(y)) with batch stats.
    M, K = x.shape
    Nout, K2 = w.shape
    assert K == K2

    # bf16 MXU operands (halved HBM traffic); accumulation / epilogue stay f32.
    xb = x if x.dtype == jnp.bfloat16 else x.astype(jnp.bfloat16)
    wb = w if w.dtype == jnp.bfloat16 else w.astype(jnp.bfloat16)
    g2 = gamma.reshape(1, Nout).astype(jnp.float32)
    be2 = beta.reshape(1, Nout).astype(jnp.float32)

    vmem_cap = _vmem_capacity_bytes()
    usable = (vmem_cap * 7) // 10        # leave headroom for compiler scratch

    # --- feature (Nout) tile --------------------------------------------------
    if tn is None:
        # Resident (M, tn) f32 output (counted double-buffered) <= usable/4.
        cap_n = max(128, (usable // 4) // max(1, 2 * 4 * M))
        if Nout >= 512:
            cap_n = min(cap_n, Nout // 2)  # >=2 N tiles keeps both v7x TCs busy
        tn = _pick_tile(Nout, cap_n)
    assert Nout % tn == 0
    num_n = Nout // tn

    x_alloc = 2 * M * K * 2              # bf16 x, conservatively counted x2
    out_alloc = 2 * M * tn * 4           # f32 output tile, double-buffered
    misc_alloc = 4 * tn * 4 + 4096       # gamma/beta tiles + slack

    # --- path 1: whole-K weight tiles, grid over N only (no accumulation) -----
    w_full_alloc = 2 * tn * K * 2        # double-buffered (tn, K) bf16 tile
    path1_need = x_alloc + out_alloc + misc_alloc + w_full_alloc
    if tk is None and not _force_stream_x and path1_need <= usable:
        vmem_limit = int(min(max(path1_need + (8 << 20), 32 << 20), vmem_cap))
        return pl.pallas_call(
            fc_bn_fused_kernel,
            out_shape=jax.ShapeDtypeStruct((M, Nout), jnp.float32),
            grid_spec=pltpu.PrefetchScalarGridSpec(
                num_scalar_prefetch=0,
                grid=(num_n,),
                in_specs=[
                    pl.BlockSpec((M, K), lambda n: (0, 0)),    # x: fetched once
                    pl.BlockSpec((tn, K), lambda n: (n, 0)),   # native [Nout, K]
                    pl.BlockSpec((1, tn), lambda n: (0, n)),   # BN weight (1.0)
                    pl.BlockSpec((1, tn), lambda n: (0, n)),   # BN bias
                ],
                out_specs=pl.BlockSpec((M, tn), lambda n: (0, n)),
            ),
            compiler_params=pltpu.CompilerParams(
                dimension_semantics=("parallel",),
                vmem_limit_bytes=vmem_limit,
            ),
        )(xb, wb, g2, be2)

    # --- path 2: K-tiled accumulation ------------------------------------------
    x_resident = (x_alloc <= usable // 3) and not _force_stream_x
    if tk is None:
        if x_resident:
            rem = max(0, usable - x_alloc - out_alloc - misc_alloc)
            cap_k = max(128, rem // (2 * tn * 2))          # weight double-buffer
        else:
            rem = max(0, usable - out_alloc - misc_alloc)
            cap_k = max(128, rem // (2 * 2 * (M + tn)))    # x + weight buffers
        tk = _pick_tile(K, cap_k)
    assert K % tk == 0
    num_k = K // tk

    if x_resident:
        x_spec = pl.BlockSpec((M, K), lambda n, k: (0, 0))   # fetched once
        need = x_alloc + out_alloc + misc_alloc + 2 * tn * tk * 2
    else:
        x_spec = pl.BlockSpec((M, tk), lambda n, k: (0, k))
        need = out_alloc + misc_alloc + 2 * 2 * (M * tk + tk * tn)
    vmem_limit = int(min(max(need + (8 << 20), 32 << 20), vmem_cap))

    kernel = _make_kacc_kernel(x_resident, tk)
    return pl.pallas_call(
        kernel,
        out_shape=jax.ShapeDtypeStruct((M, Nout), jnp.float32),
        grid_spec=pltpu.PrefetchScalarGridSpec(
            num_scalar_prefetch=0,
            grid=(num_n, num_k),
            in_specs=[
                x_spec,
                pl.BlockSpec((tn, tk), lambda n, k: (n, k)),  # native [Nout, K]
                pl.BlockSpec((1, tn), lambda n, k: (0, n)),   # BN weight (1.0)
                pl.BlockSpec((1, tn), lambda n, k: (0, n)),   # BN bias
            ],
            out_specs=pl.BlockSpec((M, tn), lambda n, k: (0, n)),
        ),
        compiler_params=pltpu.CompilerParams(
            dimension_semantics=("parallel", "arbitrary"),
            vmem_limit_bytes=vmem_limit,
        ),
    )(xb, wb, g2, be2)


# ----------------------------------------------------------------------------
# Pure-JAX reference
# ----------------------------------------------------------------------------
def fc_reference(x, w, b, gamma, beta):
    y = x @ w.T + b[None, :]
    mu = jnp.mean(y, axis=0, keepdims=True)
    var = jnp.mean((y - mu) ** 2, axis=0, keepdims=True)
    return (y - mu) * lax.rsqrt(var + EPS) * gamma[None, :] + beta[None, :]


if __name__ == "__main__":
    # Small shapes consistent with FC(inplanes, outplanes) on [batch, inplanes].
    batch, inplanes, outplanes = 16, 512, 256

    key = jax.random.PRNGKey(0)
    kx, kw, kb = jax.random.split(key, 3)

    x = jax.random.normal(kx, (batch, inplanes), dtype=jnp.float32)

    # Deterministic parameter init (shapes from nn.Linear / nn.BatchNorm1d).
    bound = 1.0 / (inplanes ** 0.5)
    w = jax.random.uniform(kw, (outplanes, inplanes), jnp.float32, -bound, bound)
    b = jax.random.uniform(kb, (outplanes,), jnp.float32, -bound, bound)
    gamma = jnp.ones((outplanes,), jnp.float32)   # nn.init.constant_(features.weight, 1.0)
    beta = jnp.zeros((outplanes,), jnp.float32)   # BatchNorm1d bias default init

    ref = fc_reference(x, w, b, gamma, beta)

    # Path 1: fully-resident, grid collapsed to N tiles only (auto selection).
    out1 = jax.block_until_ready(fc_forward(x, w, b, gamma, beta))
    assert out1.shape == (batch, outplanes) and out1.dtype == jnp.float32
    assert jnp.allclose(out1, ref, atol=3e-2, rtol=3e-2), "path1 mismatch vs reference"

    # Path 2 (resident x, K-tiled weights): exercised via explicit tiles.
    out2 = jax.block_until_ready(fc_forward(x, w, b, gamma, beta, tn=128, tk=256))
    assert jnp.allclose(out2, ref, atol=3e-2, rtol=3e-2), "path2 mismatch vs reference"

    # Path 2 (streamed x): exercised via the debug flag.
    out3 = jax.block_until_ready(
        fc_forward(x, w, b, gamma, beta, tn=128, tk=256, _force_stream_x=True))
    assert jnp.allclose(out3, ref, atol=3e-2, rtol=3e-2), "path2-stream mismatch vs reference"

    # TODO(synk): BatchNorm1d's training-mode running_mean/running_var buffer
    # updates are not produced (forward output only).
    print("KERNEL_OK")
</pallas_src>

<mosaic_0001>
module attributes {stable_mosaic.version = 11 : i64} {
  func.func @fc_bn_fused_kernel(%arg0: i32, %arg1: memref<16x512xbf16, #tpu.memory_space<vmem>>, %arg2: memref<256x512xbf16, #tpu.memory_space<vmem>>, %arg3: memref<1x256xf32, #tpu.memory_space<vmem>>, %arg4: memref<1x256xf32, #tpu.memory_space<vmem>>, %arg5: memref<16x256xf32, #tpu.memory_space<vmem>>) attributes {dimension_semantics = [#tpu.dimension_semantics<parallel>], iteration_bounds = array<i64: 1>, scalar_prefetch = 0 : i64, scratch_operands = 0 : i64, tpu.core_type = #tpu.core_type<tc>, window_params = [{pipeline_mode = #tpu.pipeline_mode<synchronous>, transform_indices = @transform_0, window_bounds = array<i64: 16, 512>}, {transform_indices = @transform_1, window_bounds = array<i64: 256, 512>}, {transform_indices = @transform_2, window_bounds = array<i64: 1, 256>}, {transform_indices = @transform_3, window_bounds = array<i64: 1, 256>}, {transform_indices = @transform_4, window_bounds = array<i64: 16, 256>}]} {
    %c0 = arith.constant 0 : index
    %c0_0 = arith.constant 0 : index
    %0 = vector.load %arg1[%c0, %c0_0] : memref<16x512xbf16, #tpu.memory_space<vmem>>, vector<16x512xbf16>
    %c0_1 = arith.constant 0 : index
    %c0_2 = arith.constant 0 : index
    %1 = vector.load %arg2[%c0_1, %c0_2] : memref<256x512xbf16, #tpu.memory_space<vmem>>, vector<256x512xbf16>
    %cst = arith.constant dense<0.000000e+00> : vector<16x256xf32>
    %2 = tpu.matmul %0, %1, %cst {dimension_numbers = #tpu.dot_dimension_numbers<[1], [1], [0], [0], [0, 0, 1, 0], [], []>} : vector<16x512xbf16>, vector<256x512xbf16>, vector<16x256xf32> -> vector<16x256xf32>
    %cst_3 = arith.constant dense<0.000000e+00> : vector<256xf32>
    %3 = vector.multi_reduction <add>, %2, %cst_3 [0] : vector<16x256xf32> to vector<256xf32>
    %4 = vector.shape_cast %3 : vector<256xf32> to vector<1x256xf32>
    %cst_4 = arith.constant 1.600000e+01 : f32
    %5 = vector.broadcast %cst_4 : f32 to vector<1x256xf32>
    %6 = arith.divf %4, %5 : vector<1x256xf32>
    %7 = vector.broadcast %6 : vector<1x256xf32> to vector<16x256xf32>
    %8 = arith.subf %2, %7 : vector<16x256xf32>
    %9 = arith.mulf %8, %8 : vector<16x256xf32>
    %cst_5 = arith.constant dense<0.000000e+00> : vector<256xf32>
    %10 = vector.multi_reduction <add>, %9, %cst_5 [0] : vector<16x256xf32> to vector<256xf32>
    %11 = vector.shape_cast %10 : vector<256xf32> to vector<1x256xf32>
    %cst_6 = arith.constant 1.600000e+01 : f32
    %12 = vector.broadcast %cst_6 : f32 to vector<1x256xf32>
    %13 = arith.divf %11, %12 : vector<1x256xf32>
    %cst_7 = arith.constant 9.99999974E-6 : f32
    %14 = vector.broadcast %cst_7 : f32 to vector<1x256xf32>
    %15 = arith.addf %13, %14 : vector<1x256xf32>
    %16 = math.rsqrt %15 : vector<1x256xf32>
    %17 = vector.broadcast %6 : vector<1x256xf32> to vector<16x256xf32>
    %18 = arith.subf %2, %17 : vector<16x256xf32>
    %19 = vector.broadcast %16 : vector<1x256xf32> to vector<16x256xf32>
    %20 = arith.mulf %18, %19 : vector<16x256xf32>
    %c0_8 = arith.constant 0 : index
    %c0_9 = arith.constant 0 : index
    %21 = vector.load %arg3[%c0_8, %c0_9] : memref<1x256xf32, #tpu.memory_space<vmem>>, vector<1x256xf32>
    %22 = vector.broadcast %21 : vector<1x256xf32> to vector<16x256xf32>
    %23 = arith.mulf %20, %22 : vector<16x256xf32>
    %c0_10 = arith.constant 0 : index
    %c0_11 = arith.constant 0 : index
    %24 = vector.load %arg4[%c0_10, %c0_11] : memref<1x256xf32, #tpu.memory_space<vmem>>, vector<1x256xf32>
    %25 = vector.broadcast %24 : vector<1x256xf32> to vector<16x256xf32>
    %26 = arith.addf %23, %25 : vector<16x256xf32>
    %c0_12 = arith.constant 0 : index
    %c0_13 = arith.constant 0 : index
    %27 = vector.load %arg5[%c0_12, %c0_13] : memref<16x256xf32, #tpu.memory_space<vmem>>, vector<16x256xf32>
    tpu.vector_store %arg5[%c0_12, %c0_13], %26 {strides = array<i32>} : memref<16x256xf32, #tpu.memory_space<vmem>>, vector<16x256xf32>,
    return
  }
  func.func @transform_0(%arg0: i32) -> (i32, i32) {
    %c0_i32 = arith.constant 0 : i32
    %c0_i32_0 = arith.constant 0 : i32
    %c0_i32_1 = arith.constant 0 : i32
    return %c0_i32, %c0_i32_0 : i32, i32
  }
  func.func @transform_1(%arg0: i32) -> (i32, i32) {
    %c0_i32 = arith.constant 0 : i32
    %c0_i32_0 = arith.constant 0 : i32
    return %arg0, %c0_i32 : i32, i32
  }
  func.func @transform_2(%arg0: i32) -> (i32, i32) {
    %c0_i32 = arith.constant 0 : i32
    %c0_i32_0 = arith.constant 0 : i32
    return %c0_i32, %arg0 : i32, i32
  }
  func.func @transform_3(%arg0: i32) -> (i32, i32) {
    %c0_i32 = arith.constant 0 : i32
    %c0_i32_0 = arith.constant 0 : i32
    return %c0_i32, %arg0 : i32, i32
  }
  func.func @transform_4(%arg0: i32) -> (i32, i32) {
    %c0_i32 = arith.constant 0 : i32
    %c0_i32_0 = arith.constant 0 : i32
    return %c0_i32, %arg0 : i32, i32
  }
}

</mosaic_0001>

<llo_original>
// kernel: tpu_custom_call.1
$region0: #{tpu_custom_call.1}
  #allocation0 [shape = 'u32[]', space=smem, size = 0x4, offset = 0x4, fixed_abs, tag = 'smem constant byte address 0x4 - core index']
  #allocation1 [shape = 'u32[144,128]{1,0:T(1,128)}', space=vmem, size = 0x12000, scoped, tag = 'internal scratch']
  %s0 = inlined_call_operand.hbm [shape: bf16[16,512], index: 0, kind: input, shape index: {}]
  %s1 = inlined_call_operand.hbm [shape: bf16[256,512], index: 1, kind: input, shape index: {}]
  %s2 = inlined_call_operand.vmem [shape: f32[1,256], index: 2, kind: input, shape index: {}]
  %s3 = inlined_call_operand.vmem [shape: f32[1,256], index: 3, kind: input, shape index: {}]
  %s4 = inlined_call_operand.hbm [shape: f32[16,256], index: 4, kind: output, shape index: {}]
  %s5 = sld [smem:[#allocation0]]
  $region34: #{tpu_custom_call.1} parent=0
    _
  %s7 = ssub.s32 1, %s5
  %s8 = scalar_select 0, %s7, %s5
  $region1: #{tpu_custom_call.1} parent=0
    #allocation2 [shape = 'u8[16384]{0}', space=vmem, size = 0x4000, scoped, tag = 'input window, operand 0, single buffered']
    #allocation3 [shape = 's32[1]{0}', space=sflag, size = 0x4, scoped, tag = 'scoped memory for tpu_custom_call.1']
    #allocation4 [shape = 's32[1]{0}', space=sflag, size = 0x4, scoped, tag = 'scoped memory for tpu_custom_call.1']
    #allocation5 [shape = 'u8[262144]{0}', space=vmem, size = 0x40000, scoped, tag = 'input window, operand 1, single buffered']
    #allocation6 [shape = 's32[1]{0}', space=sflag, size = 0x4, scoped, tag = 'scoped memory for tpu_custom_call.1']
    #allocation7 [shape = 'u8[16384]{0}', space=vmem, size = 0x4000, scoped, tag = 'output window, operand 0, single buffered']
    %9 = vsyncpa [#allocation3], 0
    %10 = vsyncpa [#allocation6], 0
    %11 = vsyncpa [#allocation4], 0
    // Predicated region
    $region2: #{tpu_custom_call.1} parent=1 // pred_check
      _
    $region3: #{tpu_custom_call.1} parent=1 // pred_check_branch
      %13 = sbr.rel (0) target = $region5
    $region4: #{tpu_custom_call.1} parent=1 // pred_region
      %s15 = ssub.s32 512, 512
      %16 = vsyncadd [#allocation3], %s15
      %s17 = sshll.u32 [#allocation2], 4
      %s18 = int_to_ptr.vmem [resolvable:$true] %s17
      %23 = dma.hbm_to_vmem [thread:$0]  %s0, 512, %s18, [#allocation3], 256, 256, 16
    $region5: #{tpu_custom_call.1} parent=1 // pred_fallthru
      _
    // Predicated region
    $region6: #{tpu_custom_call.1} parent=1 // pred_check
      _
    $region7: #{tpu_custom_call.1} parent=1 // pred_check_branch
      %25 = sbr.rel (0) target = $region9
    $region8: #{tpu_custom_call.1} parent=1 // pred_region
      %s27 = ssub.s32 8192, 8192
      %28 = vsyncadd [#allocation6], %s27
      %s29 = sshll.u32 [#allocation5], 4
      %s30 = int_to_ptr.vmem [resolvable:$true] %s29
      %35 = dma.hbm_to_vmem [thread:$0]  %s1, 8192, %s30, [#allocation6], 256, 256, 16
    $region9: #{tpu_custom_call.1} parent=1 // pred_fallthru
      _
    // Predicated region
    $region10: #{tpu_custom_call.1} parent=1 // pred_check
      _
    $region11: #{tpu_custom_call.1} parent=1 // pred_check_branch
      %37 = sbr.rel (0) target = $region13
    $region12: #{tpu_custom_call.1} parent=1 // pred_region
      _
    $region13: #{tpu_custom_call.1} parent=1 // pred_fallthru
      _
    // Predicated region
    $region14: #{tpu_custom_call.1} parent=1 // pred_check
      _
    $region15: #{tpu_custom_call.1} parent=1 // pred_check_branch
      %39 = sbr.rel (0) target = $region17
    $region16: #{tpu_custom_call.1} parent=1 // pred_region
      _
    $region17: #{tpu_custom_call.1} parent=1 // pred_fallthru
      _
    // Predicated region
    $region18: #{tpu_custom_call.1} parent=1 // pred_check
      _
    $region19: #{tpu_custom_call.1} parent=1 // pred_check_branch
      %41 = sbr.rel (0) target = $region21
    $region20: #{tpu_custom_call.1} parent=1 // pred_region
      %42 = dma.done [#allocation3], 512
    $region21: #{tpu_custom_call.1} parent=1 // pred_fallthru
      _
    // Predicated region
    $region22: #{tpu_custom_call.1} parent=1 // pred_check
      _
    $region23: #{tpu_custom_call.1} parent=1 // pred_check_branch
      %44 = sbr.rel (0) target = $region25
    $region24: #{tpu_custom_call.1} parent=1 // pred_region
      %45 = dma.done [#allocation6], 8192
    $region25: #{tpu_custom_call.1} parent=1 // pred_fallthru
      _
    %v46 = vld [vmem:[#allocation2] sm:$0xff]
    %v47 = vld [vmem:[#allocation2 + $0x8] sm:$0xff]
    %v48 = vld [vmem:[#allocation2 + $0x10] sm:$0xff]
    %v49 = vld [vmem:[#allocation2 + $0x18] sm:$0xff]
    %v50 = vld [vmem:[#allocation5] sm:$0xff]
    %v51 = vld [vmem:[#allocation5 + $0x8] sm:$0xff]
    %v52 = vld [vmem:[#allocation5 + $0x10] sm:$0xff]
    %v53 = vld [vmem:[#allocation5 + $0x18] sm:$0xff]
    %v54 = vld [vmem:[#allocation5 + $0x20] sm:$0xff]
    %v55 = vld [vmem:[#allocation5 + $0x28] sm:$0xff]
    %v56 = vld [vmem:[#allocation5 + $0x30] sm:$0xff]
    %v57 = vld [vmem:[#allocation5 + $0x38] sm:$0xff]
    %v58 = vld [vmem:[#allocation5 + $0x40] sm:$0xff]
    %v59 = vld [vmem:[#allocation5 + $0x48] sm:$0xff]
    %v60 = vld [vmem:[#allocation5 + $0x50] sm:$0xff]
    %v61 = vld [vmem:[#allocation5 + $0x58] sm:$0xff]
    %v62 = vld [vmem:[#allocation5 + $0x60] sm:$0xff]
    %v63 = vld [vmem:[#allocation5 + $0x68] sm:$0xff]
    %v64 = vld [vmem:[#allocation5 + $0x70] sm:$0xff]
    %v65 = vld [vmem:[#allocation5 + $0x78] sm:$0xff]
    %v66 = vld [vmem:[#allocation5 + $0x80] sm:$0xff]
    %v67 = vld [vmem:[#allocation5 + $0x88] sm:$0xff]
    %v68 = vld [vmem:[#allocation5 + $0x90] sm:$0xff]
    %v69 = vld [vmem:[#allocation5 + $0x98] sm:$0xff]
    %v70 = vld [vmem:[#allocation5 + $0xa0] sm:$0xff]
    %v71 = vld [vmem:[#allocation5 + $0xa8] sm:$0xff]
    %v72 = vld [vmem:[#allocation5 + $0xb0] sm:$0xff]
    %v73 = vld [vmem:[#allocation5 + $0xb8] sm:$0xff]
    %v74 = vld [vmem:[#allocation5 + $0xc0] sm:$0xff]
    %v75 = vld [vmem:[#allocation5 + $0xc8] sm:$0xff]
    %v76 = vld [vmem:[#allocation5 + $0xd0] sm:$0xff]
    %v77 = vld [vmem:[#allocation5 + $0xd8] sm:$0xff]
    %v78 = vld [vmem:[#allocation5 + $0xe0] sm:$0xff]
    %v79 = vld [vmem:[#allocation5 + $0xe8] sm:$0xff]
    %v80 = vld [vmem:[#allocation5 + $0xf0] sm:$0xff]
    %v81 = vld [vmem:[#allocation5 + $0xf8] sm:$0xff]
    %v82 = vld [vmem:[#allocation5 + $0x100] sm:$0xff]
    %v83 = vld [vmem:[#allocation5 + $0x108] sm:$0xff]
    %v84 = vld [vmem:[#allocation5 + $0x110] sm:$0xff]
    %v85 = vld [vmem:[#allocation5 + $0x118] sm:$0xff]
    %v86 = vld [vmem:[#allocation5 + $0x120] sm:$0xff]
    %v87 = vld [vmem:[#allocation5 + $0x128] sm:$0xff]
    %v88 = vld [vmem:[#allocation5 + $0x130] sm:$0xff]
    %v89 = vld [vmem:[#allocation5 + $0x138] sm:$0xff]
    %v90 = vld [vmem:[#allocation5 + $0x140] sm:$0xff]
    %v91 = vld [vmem:[#allocation5 + $0x148] sm:$0xff]
    %v92 = vld [vmem:[#allocation5 + $0x150] sm:$0xff]
    %v93 = vld [vmem:[#allocation5 + $0x158] sm:$0xff]
    %v94 = vld [vmem:[#allocation5 + $0x160] sm:$0xff]
    %v95 = vld [vmem:[#allocation5 + $0x168] sm:$0xff]
    %v96 = vld [vmem:[#allocation5 + $0x170] sm:$0xff]
    %v97 = vld [vmem:[#allocation5 + $0x178] sm:$0xff]
    %v98 = vld [vmem:[#allocation5 + $0x180] sm:$0xff]
    %v99 = vld [vmem:[#allocation5 + $0x188] sm:$0xff]
    %v100 = vld [vmem:[#allocation5 + $0x190] sm:$0xff]
    %v101 = vld [vmem:[#allocation5 + $0x198] sm:$0xff]
    %v102 = vld [vmem:[#allocation5 + $0x1a0] sm:$0xff]
    %v103 = vld [vmem:[#allocation5 + $0x1a8] sm:$0xff]
    %v104 = vld [vmem:[#allocation5 + $0x1b0] sm:$0xff]
    %v105 = vld [vmem:[#allocation5 + $0x1b8] sm:$0xff]
    %v106 = vld [vmem:[#allocation5 + $0x1c0] sm:$0xff]
    %v107 = vld [vmem:[#allocation5 + $0x1c8] sm:$0xff]
    %v108 = vld [vmem:[#allocation5 + $0x1d0] sm:$0xff]
    %v109 = vld [vmem:[#allocation5 + $0x1d8] sm:$0xff]
    %v110 = vld [vmem:[#allocation5 + $0x1e0] sm:$0xff]
    %v111 = vld [vmem:[#allocation5 + $0x1e8] sm:$0xff]
    %v112 = vld [vmem:[#allocation5 + $0x1f0] sm:$0xff]
    %v113 = vld [vmem:[#allocation5 + $0x1f8] sm:$0xff]
    %v118 = vunpack.c.l.b16 %v46
    %v119 = vunpack.c.h.b16 %v46
    %v120 = vunpack.c.l.b16 %v47
    %v121 = vunpack.c.h.b16 %v47
    %v122 = vunpack.c.l.b16 %v48
    %v123 = vunpack.c.h.b16 %v48
    %v124 = vunpack.c.l.b16 %v49
    %v125 = vunpack.c.h.b16 %v49
    %v126 = vpack.c.b16 %v122, %v118
    %v127 = vpack.c.b16 %v123, %v119
    %v128 = vpack.c.b16 %v124, %v120
    %v129 = vpack.c.b16 %v125, %v121
    %v198 = vunpack.c.l.b16 %v50
    %v199 = vunpack.c.h.b16 %v50
    %v200 = vunpack.c.l.b16 %v51
    %v201 = vunpack.c.h.b16 %v51
    %v202 = vunpack.c.l.b16 %v52
    %v203 = vunpack.c.h.b16 %v52
    %v204 = vunpack.c.l.b16 %v53
    %v205 = vunpack.c.h.b16 %v53
    %v206 = vunpack.c.l.b16 %v54
    %v207 = vunpack.c.h.b16 %v54
    %v208 = vunpack.c.l.b16 %v55
    %v209 = vunpack.c.h.b16 %v55
    %v210 = vunpack.c.l.b16 %v56
    %v211 = vunpack.c.h.b16 %v56
    %v212 = vunpack.c.l.b16 %v57
    %v213 = vunpack.c.h.b16 %v57
    %v214 = vunpack.c.l.b16 %v58
    %v215 = vunpack.c.h.b16 %v58
    %v216 = vunpack.c.l.b16 %v59
    %v217 = vunpack.c.h.b16 %v59
    %v218 = vunpack.c.l.b16 %v60
    %v219 = vunpack.c.h.b16 %v60
    %v220 = vunpack.c.l.b16 %v61
    %v221 = vunpack.c.h.b16 %v61
    %v222 = vunpack.c.l.b16 %v62
    %v223 = vunpack.c.h.b16 %v62
    %v224 = vunpack.c.l.b16 %v63
    %v225 = vunpack.c.h.b16 %v63
    %v226 = vunpack.c.l.b16 %v64
    %v227 = vunpack.c.h.b16 %v64
    %v228 = vunpack.c.l.b16 %v65
    %v229 = vunpack.c.h.b16 %v65
    %v230 = vunpack.c.l.b16 %v66
    %v231 = vunpack.c.h.b16 %v66
    %v232 = vunpack.c.l.b16 %v67
    %v233 = vunpack.c.h.b16 %v67
    %v234 = vunpack.c.l.b16 %v68
    %v235 = vunpack.c.h.b16 %v68
    %v236 = vunpack.c.l.b16 %v69
    %v237 = vunpack.c.h.b16 %v69
    %v238 = vunpack.c.l.b16 %v70
    %v239 = vunpack.c.h.b16 %v70
    %v240 = vunpack.c.l.b16 %v71
    %v241 = vunpack.c.h.b16 %v71
    %v242 = vunpack.c.l.b16 %v72
    %v243 = vunpack.c.h.b16 %v72
    %v244 = vunpack.c.l.b16 %v73
    %v245 = vunpack.c.h.b16 %v73
    %v246 = vunpack.c.l.b16 %v74
    %v247 = vunpack.c.h.b16 %v74
    %v248 = vunpack.c.l.b16 %v75
    %v249 = vunpack.c.h.b16 %v75
    %v250 = vunpack.c.l.b16 %v76
    %v251 = vunpack.c.h.b16 %v76
    %v252 = vunpack.c.l.b16 %v77
    %v253 = vunpack.c.h.b16 %v77
    %v254 = vunpack.c.l.b16 %v78
    %v255 = vunpack.c.h.b16 %v78
    %v256 = vunpack.c.l.b16 %v79
    %v257 = vunpack.c.h.b16 %v79
    %v258 = vunpack.c.l.b16 %v80
    %v259 = vunpack.c.h.b16 %v80
    %v260 = vunpack.c.l.b16 %v81
    %v261 = vunpack.c.h.b16 %v81
    %v262 = vunpack.c.l.b16 %v82
    %v263 = vunpack.c.h.b16 %v82
    %v264 = vunpack.c.l.b16 %v83
    %v265 = vunpack.c.h.b16 %v83
    %v266 = vunpack.c.l.b16 %v84
    %v267 = vunpack.c.h.b16 %v84
    %v268 = vunpack.c.l.b16 %v85
    %v269 = vunpack.c.h.b16 %v85
    %v270 = vunpack.c.l.b16 %v86
    %v271 = vunpack.c.h.b16 %v86
    %v272 = vunpack.c.l.b16 %v87
    %v273 = vunpack.c.h.b16 %v87
    %v274 = vunpack.c.l.b16 %v88
    %v275 = vunpack.c.h.b16 %v88
    %v276 = vunpack.c.l.b16 %v89
    %v277 = vunpack.c.h.b16 %v89
    %v278 = vunpack.c.l.b16 %v90
    %v279 = vunpack.c.h.b16 %v90
    %v280 = vunpack.c.l.b16 %v91
    %v281 = vunpack.c.h.b16 %v91
    %v282 = vunpack.c.l.b16 %v92
    %v283 = vunpack.c.h.b16 %v92
    %v284 = vunpack.c.l.b16 %v93
    %v285 = vunpack.c.h.b16 %v93
    %v286 = vunpack.c.l.b16 %v94
    %v287 = vunpack.c.h.b16 %v94
    %v288 = vunpack.c.l.b16 %v95
    %v289 = vunpack.c.h.b16 %v95
    %v290 = vunpack.c.l.b16 %v96
    %v291 = vunpack.c.h.b16 %v96
    %v292 = vunpack.c.l.b16 %v97
    %v293 = vunpack.c.h.b16 %v97
    %v294 = vunpack.c.l.b16 %v98
    %v295 = vunpack.c.h.b16 %v98
    %v296 = vunpack.c.l.b16 %v99
    %v297 = vunpack.c.h.b16 %v99
    %v298 = vunpack.c.l.b16 %v100
    %v299 = vunpack.c.h.b16 %v100
    %v300 = vunpack.c.l.b16 %v101
    %v301 = vunpack.c.h.b16 %v101
    %v302 = vunpack.c.l.b16 %v102
    %v303 = vunpack.c.h.b16 %v102
    %v304 = vunpack.c.l.b16 %v103
    %v305 = vunpack.c.h.b16 %v103
    %v306 = vunpack.c.l.b16 %v104
    %v307 = vunpack.c.h.b16 %v104
    %v308 = vunpack.c.l.b16 %v105
    %v309 = vunpack.c.h.b16 %v105
    %v310 = vunpack.c.l.b16 %v106
    %v311 = vunpack.c.h.b16 %v106
    %v312 = vunpack.c.l.b16 %v107
    %v313 = vunpack.c.h.b16 %v107
    %v314 = vunpack.c.l.b16 %v108
    %v315 = vunpack.c.h.b16 %v108
    %v316 = vunpack.c.l.b16 %v109
    %v317 = vunpack.c.h.b16 %v109
    %v318 = vunpack.c.l.b16 %v110
    %v319 = vunpack.c.h.b16 %v110
    %v320 = vunpack.c.l.b16 %v111
    %v321 = vunpack.c.h.b16 %v111
    %v322 = vunpack.c.l.b16 %v112
    %v323 = vunpack.c.h.b16 %v112
    %v324 = vunpack.c.l.b16 %v113
    %v325 = vunpack.c.h.b16 %v113
    %v326 = vpack.c.b16 %v202, %v198
    %v327 = vpack.c.b16 %v203, %v199
    %v328 = vpack.c.b16 %v204, %v200
    %v329 = vpack.c.b16 %v205, %v201
    %v330 = vpack.c.b16 %v210, %v206
    %v331 = vpack.c.b16 %v211, %v207
    %v332 = vpack.c.b16 %v212, %v208
    %v333 = vpack.c.b16 %v213, %v209
    %v334 = vpack.c.b16 %v218, %v214
    %v335 = vpack.c.b16 %v219, %v215
    %v336 = vpack.c.b16 %v220, %v216
    %v337 = vpack.c.b16 %v221, %v217
    %v338 = vpack.c.b16 %v226, %v222
    %v339 = vpack.c.b16 %v227, %v223
    %v340 = vpack.c.b16 %v228, %v224
    %v341 = vpack.c.b16 %v229, %v225
    %v342 = vpack.c.b16 %v234, %v230
    %v343 = vpack.c.b16 %v235, %v231
    %v344 = vpack.c.b16 %v236, %v232
    %v345 = vpack.c.b16 %v237, %v233
    %v346 = vpack.c.b16 %v242, %v238
    %v347 = vpack.c.b16 %v243, %v239
    %v348 = vpack.c.b16 %v244, %v240
    %v349 = vpack.c.b16 %v245, %v241
    %v350 = vpack.c.b16 %v250, %v246
    %v351 = vpack.c.b16 %v251, %v247
    %v352 = vpack.c.b16 %v252, %v248
    %v353 = vpack.c.b16 %v253, %v249
    %v354 = vpack.c.b16 %v258, %v254
    %v355 = vpack.c.b16 %v259, %v255
    %v356 = vpack.c.b16 %v260, %v256
    %v357 = vpack.c.b16 %v261, %v257
    %v358 = vpack.c.b16 %v266, %v262
    %v359 = vpack.c.b16 %v267, %v263
    %v360 = vpack.c.b16 %v268, %v264
    %v361 = vpack.c.b16 %v269, %v265
    %v362 = vpack.c.b16 %v274, %v270
    %v363 = vpack.c.b16 %v275, %v271
    %v364 = vpack.c.b16 %v276, %v272
    %v365 = vpack.c.b16 %v277, %v273
    %v366 = vpack.c.b16 %v282, %v278
    %v367 = vpack.c.b16 %v283, %v279
    %v368 = vpack.c.b16 %v284, %v280
    %v369 = vpack.c.b16 %v285, %v281
    %v370 = vpack.c.b16 %v290, %v286
    %v371 = vpack.c.b16 %v291, %v287
    %v372 = vpack.c.b16 %v292, %v288
    %v373 = vpack.c.b16 %v293, %v289
    %v374 = vpack.c.b16 %v298, %v294
    %v375 = vpack.c.b16 %v299, %v295
    %v376 = vpack.c.b16 %v300, %v296
    %v377 = vpack.c.b16 %v301, %v297
    %v378 = vpack.c.b16 %v306, %v302
    %v379 = vpack.c.b16 %v307, %v303
    %v380 = vpack.c.b16 %v308, %v304
    %v381 = vpack.c.b16 %v309, %v305
    %v382 = vpack.c.b16 %v314, %v310
    %v383 = vpack.c.b16 %v315, %v311
    %v384 = vpack.c.b16 %v316, %v312
    %v385 = vpack.c.b16 %v317, %v313
    %v386 = vpack.c.b16 %v322, %v318
    %v387 = vpack.c.b16 %v323, %v319
    %v388 = vpack.c.b16 %v324, %v320
    %v389 = vpack.c.b16 %v325, %v321
    %454 = vmatprep.subr.bf16.mxu0 %v327
    %455 = vmatpush1.bf16.xpose.msra.mxu0 %v326
    %456 = vmatprep.subr.bf16.mxu0 %v331
    %457 = vmatpush1.bf16.xpose.msra.mxu0 %v330
    %458 = vmatprep.subr.bf16.mxu0 %v335
    %459 = vmatpush1.bf16.xpose.msra.mxu0 %v334
    %460 = vmatprep.subr.bf16.mxu0 %v339
    %461 = vmatpush1.bf16.xpose.msra.mxu0 %v338
    %462 = vmatprep.subr.bf16.mxu0 %v343
    %463 = vmatpush1.bf16.xpose.msra.mxu0 %v342
    %464 = vmatprep.subr.bf16.mxu0 %v347
    %465 = vmatpush1.bf16.xpose.msra.mxu0 %v346
    %466 = vmatprep.subr.bf16.mxu0 %v351
    %467 = vmatpush1.bf16.xpose.msra.mxu0 %v350
    %468 = vmatprep.subr.bf16.mxu0 %v355
    %469 = vmatpush1.bf16.xpose.msra.mxu0 %v354
    %470 = vmatprep.subr.bf16.mxu0 %v359
    %471 = vmatpush1.bf16.xpose.msra.mxu0 %v358
    %472 = vmatprep.subr.bf16.mxu0 %v363
    %473 = vmatpush1.bf16.xpose.msra.mxu0 %v362
    %474 = vmatprep.subr.bf16.mxu0 %v367
    %475 = vmatpush1.bf16.xpose.msra.mxu0 %v366
    %476 = vmatprep.subr.bf16.mxu0 %v371
    %477 = vmatpush1.bf16.xpose.msra.mxu0 %v370
    %478 = vmatprep.subr.bf16.mxu0 %v375
    %479 = vmatpush1.bf16.xpose.msra.mxu0 %v374
    %480 = vmatprep.subr.bf16.mxu0 %v379
    %481 = vmatpush1.bf16.xpose.msra.mxu0 %v378
    %482 = vmatprep.subr.bf16.mxu0 %v383
    %483 = vmatpush1.bf16.xpose.msra.mxu0 %v382
    %484 = vmatprep.subr.bf16.mxu0 %v387
    %485 = vmatpush1.bf16.xpose.msra.mxu0 %v386
    %486 = vmatprep.mubr.bf16.mxu0 %v127
    %487 = vmatmul.mubr.bf16.gmra.mrb[0].mxu0 %v126
    %v488 = vpop.f32.mrb[0].mxu0
    %v489 = vadd.f32 0.0, %v488
    %v490 = vpop.f32.mrb[0].mxu0
    %v491 = vadd.f32 0.0, %v490
    %v492 = vpop.f32.mrb[0].mxu0
    %v493 = vadd.f32 0.0, %v492
    %v494 = vpop.f32.mrb[0].mxu0
    %v495 = vadd.f32 0.0, %v494
    %496 = vdwg.mxu0
    %497 = vmatprep.subr.bf16.mxu0 %v329
    %498 = vmatpush1.bf16.xpose.msra.mxu0 %v328
    %499 = vmatprep.subr.bf16.mxu0 %v333
    %500 = vmatpush1.bf16.xpose.msra.mxu0 %v332
    %501 = vmatprep.subr.bf16.mxu0 %v337
    %502 = vmatpush1.bf16.xpose.msra.mxu0 %v336
    %503 = vmatprep.subr.bf16.mxu0 %v341
    %504 = vmatpush1.bf16.xpose.msra.mxu0 %v340
    %505 = vmatprep.subr.bf16.mxu0 %v345
    %506 = vmatpush1.bf16.xpose.msra.mxu0 %v344
    %507 = vmatprep.subr.bf16.mxu0 %v349
    %508 = vmatpush1.bf16.xpose.msra.mxu0 %v348
    %509 = vmatprep.subr.bf16.mxu0 %v353
    %510 = vmatpush1.bf16.xpose.msra.mxu0 %v352
    %511 = vmatprep.subr.bf16.mxu0 %v357
    %512 = vmatpush1.bf16.xpose.msra.mxu0 %v356
    %513 = vmatprep.subr.bf16.mxu0 %v361
    %514 = vmatpush1.bf16.xpose.msra.mxu0 %v360
    %515 = vmatprep.subr.bf16.mxu0 %v365
    %516 = vmatpush1.bf16.xpose.msra.mxu0 %v364
    %517 = vmatprep.subr.bf16.mxu0 %v369
    %518 = vmatpush1.bf16.xpose.msra.mxu0 %v368
    %519 = vmatprep.subr.bf16.mxu0 %v373
    %520 = vmatpush1.bf16.xpose.msra.mxu0 %v372
    %521 = vmatprep.subr.bf16.mxu0 %v377
    %522 = vmatpush1.bf16.xpose.msra.mxu0 %v376
    %523 = vmatprep.subr.bf16.mxu0 %v381
    %524 = vmatpush1.bf16.xpose.msra.mxu0 %v380
    %525 = vmatprep.subr.bf16.mxu0 %v385
    %526 = vmatpush1.bf16.xpose.msra.mxu0 %v384
    %527 = vmatprep.subr.bf16.mxu0 %v389
    %528 = vmatpush1.bf16.xpose.msra.mxu0 %v388
    %529 = vmatprep.mubr.bf16.mxu0 %v129
    %530 = vmatmul.mubr.bf16.gmra.mrb[0].mxu0 %v128
    %v531 = vpop.f32.mrb[0].mxu0
    %v532 = vadd.f32 %v489, %v531
    %v533 = vpop.f32.mrb[0].mxu0
    %v534 = vadd.f32 %v491, %v533
    %v535 = vpop.f32.mrb[0].mxu0
    %v536 = vadd.f32 %v493, %v535
    %v537 = vpop.f32.mrb[0].mxu0
    %v538 = vadd.f32 %v495, %v537
    %539 = vdwg.mxu0
    %v540 = vadd.f32 %v532, %v536
    %v541 = vrot.slane %v540, 4
    %v542 = vadd.f32 %v540, %v541
    %v543 = vrot.slane %v542, 2
    %v544 = vadd.f32 %v542, %v543
    %v545 = vrot.slane %v544, 1
    %v546 = vadd.f32 %v544, %v545
    %v547 = vadd.f32 %v534, %v538
    %v548 = vrot.slane %v547, 4
    %v549 = vadd.f32 %v547, %v548
    %v550 = vrot.slane %v549, 2
    %v551 = vadd.f32 %v549, %v550
    %v552 = vrot.slane %v551, 1
    %v553 = vadd.f32 %v551, %v552
    %v554 = vrcp.pop 16.0
    %v555 = vmul.f32 %v546, %v554
    %v556 = vmul.f32 %v553, %v554
    %v557 = vsub.f32 %v532, %v555
    %v558 = vsub.f32 %v534, %v556
    %v559 = vsub.f32 %v536, %v555
    %v560 = vsub.f32 %v538, %v556
    %v561 = vmul.f32 %v557, %v557
    %v562 = vmul.f32 %v558, %v558
    %v563 = vmul.f32 %v559, %v559
    %v564 = vmul.f32 %v560, %v560
    %v565 = vadd.f32 %v561, %v563
    %v566 = vrot.slane %v565, 4
    %v567 = vadd.f32 %v565, %v566
    %v568 = vrot.slane %v567, 2
    %v569 = vadd.f32 %v567, %v568
    %v570 = vrot.slane %v569, 1
    %v571 = vadd.f32 %v569, %v570
    %v572 = vadd.f32 %v562, %v564
    %v573 = vrot.slane %v572, 4
    %v574 = vadd.f32 %v572, %v573
    %v575 = vrot.slane %v574, 2
    %v576 = vadd.f32 %v574, %v575
    %v577 = vrot.slane %v576, 1
    %v578 = vadd.f32 %v576, %v577
    %v579 = vmul.f32 %v571, %v554
    %v580 = vmul.f32 %v578, %v554
    %v581 = vadd.f32 %v579, 1e-05
    %v582 = vadd.f32 %v580, 1e-05
    %v583 = vrsqrt.pop %v581
    %v584 = vrsqrt.pop %v582
    %v585 = vmul.f32 %v557, %v583
    %v586 = vmul.f32 %v558, %v584
    %v587 = vmul.f32 %v559, %v583
    %v588 = vmul.f32 %v560, %v584
    %v589 = vld [vmem:[%s2] sm:$0x3]
    %v591 = vlaneseq
    %v592 = vshrl.u32 %v591, 7
    %v593 = vsub.s32 0, %v592
    %v594 = vrot.slane %v589, %v593
    %v595 = vlaneseq
    %v596 = vshrl.u32 %v595, 7
    %v597 = vsub.s32 1, %v596
    %v598 = vrot.slane %v589, %v597
    %v601 = vmul.f32 %v585, %v594
    %v602 = vmul.f32 %v586, %v598
    %v603 = vmul.f32 %v587, %v594
    %v604 = vmul.f32 %v588, %v598
    %v605 = vld [vmem:[%s3] sm:$0x3]
    %v607 = vlaneseq
    %v608 = vshrl.u32 %v607, 7
    %v609 = vsub.s32 0, %v608
    %v610 = vrot.slane %v605, %v609
    %v611 = vlaneseq
    %v612 = vshrl.u32 %v611, 7
    %v613 = vsub.s32 1, %v612
    %v614 = vrot.slane %v605, %v613
    %v617 = vadd.f32 %v601, %v610
    %v618 = vadd.f32 %v602, %v614
    %v619 = vadd.f32 %v603, %v610
    %v620 = vadd.f32 %v604, %v614
    %621 = vst [vmem:[#allocation7] sm:$0xff] %v617
    %622 = vst [vmem:[#allocation7 + $0x8] sm:$0xff] %v618
    %623 = vst [vmem:[#allocation7 + $0x10] sm:$0xff] %v619
    %624 = vst [vmem:[#allocation7 + $0x18] sm:$0xff] %v620
    // Predicated region
    $region26: #{tpu_custom_call.1} parent=1 // pred_check
      _
    $region27: #{tpu_custom_call.1} parent=1 // pred_check_branch
      %626 = sbr.rel (0) target = $region29
    $region28: #{tpu_custom_call.1} parent=1 // pred_region
      %s628 = ssub.s32 512, 512
      %629 = vsyncadd [#allocation4], %s628
      %s630 = sshll.u32 [#allocation7], 4
      %s631 = int_to_ptr.vmem [resolvable:$true] %s630
      %636 = dma.vmem_to_hbm [thread:$0]  %s631, 512, %s4, [#allocation4], 256, 256, 16
    $region29: #{tpu_custom_call.1} parent=1 // pred_fallthru
      _
    // Predicated region
    $region30: #{tpu_custom_call.1} parent=1 // pred_check
      _
    $region31: #{tpu_custom_call.1} parent=1 // pred_check_branch
      %638 = sbr.rel (0) target = $region33
    $region32: #{tpu_custom_call.1} parent=1 // pred_region
      %639 = dma.done [#allocation4], 512
    $region33: #{tpu_custom_call.1} parent=1 // pred_fallthru
      _
    %640 = vsyncpa [#allocation3], 1
    %641 = vsyncpa [#allocation6], 1
    %642 = vsyncpa [#allocation4], 1

</llo_original>
